<compile_context>
chip_gen: v6e
topology: v6e:2x2x1
jax: 0.10.0
libtpu: 0.0.40
codegen_flags: <defaults>
</compile_context>

<pallas_src>
import jax
import jax.numpy as jnp
from jax.experimental import pallas as pl
from jax.experimental.pallas import tpu as pltpu

LAYER_SIZE = 128
H1 = 2 * LAYER_SIZE   # 256
H2 = LAYER_SIZE       # 128


def _critic_kernel(ob_ref, act_ref,
                   w1o_ref, w1a_ref, b1_ref, a1_ref,
                   w2_ref, b2_ref, a2_ref,
                   w3_ref, b3_ref,
                   q_ref):
    """One batch tile of the critic MLP (concat fused as a split GEMM)."""
    mm_dt = w1o_ref.dtype  # matmul operand dtype (bf16 by default)

    ob = ob_ref[...]
    act = act_ref[...]

    # Layer 1: Linear(input_dim -> 256), concat folded into two partial GEMMs.
    h1 = (jnp.dot(ob.astype(mm_dt), w1o_ref[...],
                  preferred_element_type=jnp.float32)
          + jnp.dot(act.astype(mm_dt), w1a_ref[...],
                    preferred_element_type=jnp.float32)
          + b1_ref[...])
    # PReLU(256), per-channel alpha; elementwise math stays f32.
    h1 = jnp.where(h1 > 0, h1, a1_ref[...] * h1)

    # Layer 2: Linear(256 -> 128) + PReLU(128).
    h2 = (jnp.dot(h1.astype(mm_dt), w2_ref[...],
                  preferred_element_type=jnp.float32) + b2_ref[...])
    h2 = jnp.where(h2 > 0, h2, a2_ref[...] * h2)

    # Layer 3: Linear(128 -> out_dim).
    # NOTE: out_dim == 1 makes this a masked lane-width-1 store; bytes are tiny
    # so we accept it (low priority per the perf review).
    q = (jnp.dot(h2.astype(mm_dt), w3_ref[...],
                 preferred_element_type=jnp.float32) + b3_ref[...])
    q_ref[...] = q.astype(q_ref.dtype)


def _round_up(n, m):
    return ((n + m - 1) // m) * m


def critic_forward(ob_goals, actions, params, *, tile_b=1024):
    """Concat + 3-layer MLP with PReLU, fully inside one batch-gridded kernel."""
    batch, ob_dim = ob_goals.shape
    act_dim = actions.shape[1]
    out_dim = params["w3"].shape[1]

    # Batch tile: large for pipelining/amortization, clamped + padded to a
    # multiple of 8 for small batches.
    tile_b = min(tile_b, max(8, _round_up(batch, 8)))
    grid = (pl.cdiv(batch, tile_b),)

    def btile(feat):
        # batch-tiled activation stream
        return pl.BlockSpec((tile_b, feat), lambda i: (i, 0))

    def resident(arr):
        # whole array, constant block index -> stays resident in VMEM
        return pl.BlockSpec(arr.shape, lambda i: (0, 0))

    flops = 2 * batch * ((ob_dim + act_dim) * H1 + H1 * H2 + H2 * out_dim)
    bytes_acc = (
        ob_goals.size * ob_goals.dtype.itemsize
        + actions.size * actions.dtype.itemsize
        + batch * out_dim * 4
        + sum(int(v.size) * v.dtype.itemsize for v in params.values())
    )

    kernel = pl.pallas_call(
        _critic_kernel,
        out_shape=jax.ShapeDtypeStruct((batch, out_dim), jnp.float32),
        grid=grid,
        in_specs=[
            btile(ob_dim),
            btile(act_dim),
            resident(params["w1_ob"]),
            resident(params["w1_act"]),
            resident(params["b1"]),
            resident(params["alpha1"]),
            resident(params["w2"]),
            resident(params["b2"]),
            resident(params["alpha2"]),
            resident(params["w3"]),
            resident(params["b3"]),
        ],
        out_specs=btile(out_dim),
        compiler_params=pltpu.CompilerParams(
            dimension_semantics=("parallel",)),
        cost_estimate=pl.CostEstimate(
            flops=flops, transcendentals=0, bytes_accessed=bytes_acc),
    )
    return kernel(
        ob_goals, actions,
        params["w1_ob"], params["w1_act"], params["b1"], params["alpha1"],
        params["w2"], params["b2"], params["alpha2"],
        params["w3"], params["b3"],
    )


def init_critic_params(key, ob_dim, act_dim, output_dim,
                       matmul_dtype=jnp.bfloat16):
    """PyTorch-style uniform init. Weights stored as [in, out] in `matmul_dtype`
    (bf16 by default, for the MXU); biases / PReLU alphas stay float32.
    w1 is pre-split into the ob_goals and actions halves (concat fusion)."""
    input_dim = ob_dim + act_dim
    dims = [(input_dim, H1), (H1, H2), (H2, output_dim)]
    params = {}
    weights = []
    for i, (fan_in, fan_out) in enumerate(dims, start=1):
        key, kw, kb = jax.random.split(key, 3)
        bound = 1.0 / jnp.sqrt(jnp.float32(fan_in))
        w = jax.random.uniform(kw, (fan_in, fan_out), jnp.float32, -bound, bound)
        weights.append(w.astype(matmul_dtype))
        params[f"b{i}"] = jax.random.uniform(
            kb, (1, fan_out), jnp.float32, -bound, bound)
    params["w1_ob"] = weights[0][:ob_dim]
    params["w1_act"] = weights[0][ob_dim:]
    params["w2"] = weights[1]
    params["w3"] = weights[2]
    params["alpha1"] = jnp.full((1, H1), 0.25, jnp.float32)   # torch PReLU default
    params["alpha2"] = jnp.full((1, H2), 0.25, jnp.float32)
    return params


def critic_ref(ob_goals, actions, params):
    """Pure-JAX reference with identical dtype handling (bf16 matmul operands,
    f32 accumulation and elementwise), for the correctness check."""
    mm_dt = params["w1_ob"].dtype
    h1 = (jnp.dot(ob_goals.astype(mm_dt), params["w1_ob"],
                  preferred_element_type=jnp.float32)
          + jnp.dot(actions.astype(mm_dt), params["w1_act"],
                    preferred_element_type=jnp.float32)
          + params["b1"])
    h1 = jnp.where(h1 > 0, h1, params["alpha1"] * h1)
    h2 = (jnp.dot(h1.astype(mm_dt), params["w2"],
                  preferred_element_type=jnp.float32) + params["b2"])
    h2 = jnp.where(h2 > 0, h2, params["alpha2"] * h2)
    return (jnp.dot(h2.astype(mm_dt), params["w3"],
                    preferred_element_type=jnp.float32) + params["b3"])


if __name__ == "__main__":
    key = jax.random.PRNGKey(0)
    k_params, k_obs, k_act = jax.random.split(key, 3)

    batch = 2
    ob_dim = 20
    act_dim = 6
    output_dim = 1   # Q-value

    params = init_critic_params(k_params, ob_dim, act_dim, output_dim)
    ob_goals = jax.random.normal(k_obs, (batch, ob_dim), jnp.float32)
    actions = jax.random.normal(k_act, (batch, act_dim), jnp.float32)

    q = critic_forward(ob_goals, actions, params)
    q = jax.block_until_ready(q)

    q_ref = critic_ref(ob_goals, actions, params)
    assert q.shape == (batch, output_dim)
    assert jnp.allclose(q, q_ref, atol=1e-3, rtol=1e-3), "mismatch vs JAX reference"

    print("KERNEL_OK")
</pallas_src>

<mosaic_0001>
module attributes {stable_mosaic.version = 11 : i64} {
  func.func @_critic_kernel(%arg0: i32, %arg1: memref<8x20xf32, #tpu.memory_space<vmem>>, %arg2: memref<8x6xf32, #tpu.memory_space<vmem>>, %arg3: memref<20x256xbf16, #tpu.memory_space<vmem>>, %arg4: memref<6x256xbf16, #tpu.memory_space<vmem>>, %arg5: memref<1x256xf32, #tpu.memory_space<vmem>>, %arg6: memref<1x256xf32, #tpu.memory_space<vmem>>, %arg7: memref<256x128xbf16, #tpu.memory_space<vmem>>, %arg8: memref<1x128xf32, #tpu.memory_space<vmem>>, %arg9: memref<1x128xf32, #tpu.memory_space<vmem>>, %arg10: memref<128x1xbf16, #tpu.memory_space<vmem>>, %arg11: memref<1x1xf32, #tpu.memory_space<vmem>>, %arg12: memref<8x1xf32, #tpu.memory_space<vmem>>) attributes {dimension_semantics = [#tpu.dimension_semantics<parallel>], iteration_bounds = array<i64: 1>, scalar_prefetch = 0 : i64, scratch_operands = 0 : i64, tpu.core_type = #tpu.core_type<tc>, window_params = [{transform_indices = @transform_0, window_bounds = array<i64: 8, 20>}, {transform_indices = @transform_1, window_bounds = array<i64: 8, 6>}, {pipeline_mode = #tpu.pipeline_mode<synchronous>, transform_indices = @transform_2, window_bounds = array<i64: 20, 256>}, {pipeline_mode = #tpu.pipeline_mode<synchronous>, transform_indices = @transform_3, window_bounds = array<i64: 6, 256>}, {pipeline_mode = #tpu.pipeline_mode<synchronous>, transform_indices = @transform_4, window_bounds = array<i64: 1, 256>}, {pipeline_mode = #tpu.pipeline_mode<synchronous>, transform_indices = @transform_5, window_bounds = array<i64: 1, 256>}, {pipeline_mode = #tpu.pipeline_mode<synchronous>, transform_indices = @transform_6, window_bounds = array<i64: 256, 128>}, {pipeline_mode = #tpu.pipeline_mode<synchronous>, transform_indices = @transform_7, window_bounds = array<i64: 1, 128>}, {pipeline_mode = #tpu.pipeline_mode<synchronous>, transform_indices = @transform_8, window_bounds = array<i64: 1, 128>}, {pipeline_mode = #tpu.pipeline_mode<synchronous>, transform_indices = @transform_9, window_bounds = array<i64: 128, 1>}, {pipeline_mode = #tpu.pipeline_mode<synchronous>, transform_indices = @transform_10, window_bounds = array<i64: 1, 1>}, {transform_indices = @transform_11, window_bounds = array<i64: 8, 1>}]} {
    %c0 = arith.constant 0 : index
    %c0_0 = arith.constant 0 : index
    %0 = vector.load %arg1[%c0, %c0_0] : memref<8x20xf32, #tpu.memory_space<vmem>>, vector<8x20xf32>
    %c0_1 = arith.constant 0 : index
    %c0_2 = arith.constant 0 : index
    %1 = vector.load %arg2[%c0_1, %c0_2] : memref<8x6xf32, #tpu.memory_space<vmem>>, vector<8x6xf32>
    %2 = arith.truncf %0 : vector<8x20xf32> to vector<8x20xbf16>
    %c0_3 = arith.constant 0 : index
    %c0_4 = arith.constant 0 : index
    %3 = vector.load %arg3[%c0_3, %c0_4] : memref<20x256xbf16, #tpu.memory_space<vmem>>, vector<20x256xbf16>
    %cst = arith.constant dense<0.000000e+00> : vector<8x256xf32>
    %4 = tpu.matmul %2, %3, %cst {dimension_numbers = #tpu.dot_dimension_numbers<[1], [0], [0], [1], [0, 0, 1, 1], [], []>} : vector<8x20xbf16>, vector<20x256xbf16>, vector<8x256xf32> -> vector<8x256xf32>
    %5 = arith.truncf %1 : vector<8x6xf32> to vector<8x6xbf16>
    %c0_5 = arith.constant 0 : index
    %c0_6 = arith.constant 0 : index
    %6 = vector.load %arg4[%c0_5, %c0_6] : memref<6x256xbf16, #tpu.memory_space<vmem>>, vector<6x256xbf16>
    %cst_7 = arith.constant dense<0.000000e+00> : vector<8x256xf32>
    %7 = tpu.matmul %5, %6, %cst_7 {dimension_numbers = #tpu.dot_dimension_numbers<[1], [0], [0], [1], [0, 0, 1, 1], [], []>} : vector<8x6xbf16>, vector<6x256xbf16>, vector<8x256xf32> -> vector<8x256xf32>
    %8 = arith.addf %4, %7 : vector<8x256xf32>
    %c0_8 = arith.constant 0 : index
    %c0_9 = arith.constant 0 : index
    %9 = vector.load %arg5[%c0_8, %c0_9] : memref<1x256xf32, #tpu.memory_space<vmem>>, vector<1x256xf32>
    %10 = vector.broadcast %9 : vector<1x256xf32> to vector<8x256xf32>
    %11 = arith.addf %8, %10 : vector<8x256xf32>
    %cst_10 = arith.constant 0.000000e+00 : f32
    %12 = vector.broadcast %cst_10 : f32 to vector<8x256xf32>
    %13 = arith.cmpf ogt, %11, %12 : vector<8x256xf32>
    %c0_11 = arith.constant 0 : index
    %c0_12 = arith.constant 0 : index
    %14 = vector.load %arg6[%c0_11, %c0_12] : memref<1x256xf32, #tpu.memory_space<vmem>>, vector<1x256xf32>
    %15 = vector.broadcast %14 : vector<1x256xf32> to vector<8x256xf32>
    %16 = arith.mulf %15, %11 : vector<8x256xf32>
    %17 = arith.select %13, %11, %16 : vector<8x256xi1>, vector<8x256xf32>
    %18 = arith.truncf %17 : vector<8x256xf32> to vector<8x256xbf16>
    %c0_13 = arith.constant 0 : index
    %c0_14 = arith.constant 0 : index
    %19 = vector.load %arg7[%c0_13, %c0_14] : memref<256x128xbf16, #tpu.memory_space<vmem>>, vector<256x128xbf16>
    %cst_15 = arith.constant dense<0.000000e+00> : vector<8x128xf32>
    %20 = tpu.matmul %18, %19, %cst_15 {dimension_numbers = #tpu.dot_dimension_numbers<[1], [0], [0], [1], [0, 0, 1, 1], [], []>} : vector<8x256xbf16>, vector<256x128xbf16>, vector<8x128xf32> -> vector<8x128xf32>
    %c0_16 = arith.constant 0 : index
    %c0_17 = arith.constant 0 : index
    %21 = vector.load %arg8[%c0_16, %c0_17] : memref<1x128xf32, #tpu.memory_space<vmem>>, vector<1x128xf32>
    %22 = vector.broadcast %21 : vector<1x128xf32> to vector<8x128xf32>
    %23 = arith.addf %20, %22 : vector<8x128xf32>
    %cst_18 = arith.constant 0.000000e+00 : f32
    %24 = vector.broadcast %cst_18 : f32 to vector<8x128xf32>
    %25 = arith.cmpf ogt, %23, %24 : vector<8x128xf32>
    %c0_19 = arith.constant 0 : index
    %c0_20 = arith.constant 0 : index
    %26 = vector.load %arg9[%c0_19, %c0_20] : memref<1x128xf32, #tpu.memory_space<vmem>>, vector<1x128xf32>
    %27 = vector.broadcast %26 : vector<1x128xf32> to vector<8x128xf32>
    %28 = arith.mulf %27, %23 : vector<8x128xf32>
    %29 = arith.select %25, %23, %28 : vector<8x128xi1>, vector<8x128xf32>
    %30 = arith.truncf %29 : vector<8x128xf32> to vector<8x128xbf16>
    %c0_21 = arith.constant 0 : index
    %c0_22 = arith.constant 0 : index
    %31 = vector.load %arg10[%c0_21, %c0_22] : memref<128x1xbf16, #tpu.memory_space<vmem>>, vector<128x1xbf16>
    %cst_23 = arith.constant dense<0.000000e+00> : vector<8x1xf32>
    %32 = tpu.matmul %30, %31, %cst_23 {dimension_numbers = #tpu.dot_dimension_numbers<[1], [0], [0], [1], [0, 0, 1, 1], [], []>} : vector<8x128xbf16>, vector<128x1xbf16>, vector<8x1xf32> -> vector<8x1xf32>
    %c0_24 = arith.constant 0 : index
    %c0_25 = arith.constant 0 : index
    %33 = vector.load %arg11[%c0_24, %c0_25] : memref<1x1xf32, #tpu.memory_space<vmem>>, vector<1x1xf32>
    %34 = vector.broadcast %33 : vector<1x1xf32> to vector<8x1xf32>
    %35 = arith.addf %32, %34 : vector<8x1xf32>
    %c0_26 = arith.constant 0 : index
    %c0_27 = arith.constant 0 : index
    %36 = vector.load %arg12[%c0_26, %c0_27] : memref<8x1xf32, #tpu.memory_space<vmem>>, vector<8x1xf32>
    tpu.vector_store %arg12[%c0_26, %c0_27], %35 {strides = array<i32>} : memref<8x1xf32, #tpu.memory_space<vmem>>, vector<8x1xf32>,
    return
  }
  func.func @transform_0(%arg0: i32) -> (i32, i32) {
    %c0_i32 = arith.constant 0 : i32
    %c0_i32_0 = arith.constant 0 : i32
    return %arg0, %c0_i32 : i32, i32
  }
  func.func @transform_1(%arg0: i32) -> (i32, i32) {
    %c0_i32 = arith.constant 0 : i32
    %c0_i32_0 = arith.constant 0 : i32
    return %arg0, %c0_i32 : i32, i32
  }
  func.func @transform_2(%arg0: i32) -> (i32, i32) {
    %c0_i32 = arith.constant 0 : i32
    %c0_i32_0 = arith.constant 0 : i32
    %c0_i32_1 = arith.constant 0 : i32
    return %c0_i32, %c0_i32_0 : i32, i32
  }
  func.func @transform_3(%arg0: i32) -> (i32, i32) {
    %c0_i32 = arith.constant 0 : i32
    %c0_i32_0 = arith.constant 0 : i32
    %c0_i32_1 = arith.constant 0 : i32
    return %c0_i32, %c0_i32_0 : i32, i32
  }
  func.func @transform_4(%arg0: i32) -> (i32, i32) {
    %c0_i32 = arith.constant 0 : i32
    %c0_i32_0 = arith.constant 0 : i32
    %c0_i32_1 = arith.constant 0 : i32
    return %c0_i32, %c0_i32_0 : i32, i32
  }
  func.func @transform_5(%arg0: i32) -> (i32, i32) {
    %c0_i32 = arith.constant 0 : i32
    %c0_i32_0 = arith.constant 0 : i32
    %c0_i32_1 = arith.constant 0 : i32
    return %c0_i32, %c0_i32_0 : i32, i32
  }
  func.func @transform_6(%arg0: i32) -> (i32, i32) {
    %c0_i32 = arith.constant 0 : i32
    %c0_i32_0 = arith.constant 0 : i32
    %c0_i32_1 = arith.constant 0 : i32
    return %c0_i32, %c0_i32_0 : i32, i32
  }
  func.func @transform_7(%arg0: i32) -> (i32, i32) {
    %c0_i32 = arith.constant 0 : i32
    %c0_i32_0 = arith.constant 0 : i32
    %c0_i32_1 = arith.constant 0 : i32
    return %c0_i32, %c0_i32_0 : i32, i32
  }
  func.func @transform_8(%arg0: i32) -> (i32, i32) {
    %c0_i32 = arith.constant 0 : i32
    %c0_i32_0 = arith.constant 0 : i32
    %c0_i32_1 = arith.constant 0 : i32
    return %c0_i32, %c0_i32_0 : i32, i32
  }
  func.func @transform_9(%arg0: i32) -> (i32, i32) {
    %c0_i32 = arith.constant 0 : i32
    %c0_i32_0 = arith.constant 0 : i32
    %c0_i32_1 = arith.constant 0 : i32
    return %c0_i32, %c0_i32_0 : i32, i32
  }
  func.func @transform_10(%arg0: i32) -> (i32, i32) {
    %c0_i32 = arith.constant 0 : i32
    %c0_i32_0 = arith.constant 0 : i32
    %c0_i32_1 = arith.constant 0 : i32
    return %c0_i32, %c0_i32_0 : i32, i32
  }
  func.func @transform_11(%arg0: i32) -> (i32, i32) {
    %c0_i32 = arith.constant 0 : i32
    %c0_i32_0 = arith.constant 0 : i32
    return %arg0, %c0_i32 : i32, i32
  }
}

</mosaic_0001>

<llo_original>
// kernel: tpu_custom_call.1
$region0: #{tpu_custom_call.1}
  #allocation0 [shape = 'u32[]', space=smem, size = 0x4, offset = 0x4, fixed_abs, tag = 'smem constant byte address 0x4 - core index']
  #allocation1 [shape = 'u32[144,128]{1,0:T(1,128)}', space=vmem, size = 0x12000, scoped, tag = 'internal scratch']
  #allocation2 [shape = 'f32[1,1]{1,0:T(1,128)S(1)}', space=vmem, size = 0x200, scoped, tag = 'scoped memory for tpu_custom_call.1']
  %s0 = inlined_call_operand.vmem [shape: f32[2,20], index: 0, kind: input, shape index: {}]
  %s1 = inlined_call_operand.vmem [shape: f32[2,6], index: 1, kind: input, shape index: {}]
  %s2 = inlined_call_operand.vmem [shape: bf16[20,256], index: 2, kind: input, shape index: {}]
  %s3 = inlined_call_operand.vmem [shape: bf16[6,256], index: 3, kind: input, shape index: {}]
  %s4 = inlined_call_operand.vmem [shape: f32[1,256], index: 4, kind: input, shape index: {}]
  %s5 = inlined_call_operand.vmem [shape: f32[1,256], index: 5, kind: input, shape index: {}]
  %s6 = inlined_call_operand.hbm [shape: bf16[256,128], index: 6, kind: input, shape index: {}]
  %s7 = inlined_call_operand.vmem [shape: f32[1,128], index: 7, kind: input, shape index: {}]
  %s8 = inlined_call_operand.vmem [shape: f32[1,128], index: 8, kind: input, shape index: {}]
  %s9 = inlined_call_operand.vmem [shape: bf16[128,1], index: 9, kind: input, shape index: {}]
  %s10 = inlined_call_operand.<no memory space> [shape: f32[1,1], index: 10, kind: input, shape index: {}]
  %s11 = inlined_call_operand.vmem [shape: f32[2,1], index: 11, kind: output, shape index: {}]
  %s12 = sld [smem:[#allocation0]]
  $region88: #{tpu_custom_call.1} parent=0
    _
  %s14 = ssub.s32 1, %s12
  %s15 = scalar_select 0, %s14, %s12
  %v16 = vstv %s10
  %17 = vst [vmem:[#allocation2] sm:$0x1] %v16
  $region1: #{tpu_custom_call.1} parent=0
    #allocation3 [shape = 'u8[65536]{0}', space=vmem, size = 0x10000, scoped, tag = 'input window, operand 6, single buffered']
    #allocation4 [shape = 's32[1]{0}', space=sflag, size = 0x4, scoped, tag = 'scoped memory for tpu_custom_call.1']
    #allocation5 [shape = 'u8[4096]{0}', space=vmem, size = 0x1000, scoped, tag = 'output window, operand 0, single buffered']
    %18 = vsyncpa [#allocation4], 0
    // Predicated region
    $region2: #{tpu_custom_call.1} parent=1 // pred_check
      _
    $region3: #{tpu_custom_call.1} parent=1 // pred_check_branch
      %20 = sbr.rel (0) target = $region5
    $region4: #{tpu_custom_call.1} parent=1 // pred_region
      _
    $region5: #{tpu_custom_call.1} parent=1 // pred_fallthru
      _
    // Predicated region
    $region6: #{tpu_custom_call.1} parent=1 // pred_check
      _
    $region7: #{tpu_custom_call.1} parent=1 // pred_check_branch
      %22 = sbr.rel (0) target = $region9
    $region8: #{tpu_custom_call.1} parent=1 // pred_region
      _
    $region9: #{tpu_custom_call.1} parent=1 // pred_fallthru
      _
    // Predicated region
    $region10: #{tpu_custom_call.1} parent=1 // pred_check
      _
    $region11: #{tpu_custom_call.1} parent=1 // pred_check_branch
      %24 = sbr.rel (0) target = $region13
    $region12: #{tpu_custom_call.1} parent=1 // pred_region
      _
    $region13: #{tpu_custom_call.1} parent=1 // pred_fallthru
      _
    // Predicated region
    $region14: #{tpu_custom_call.1} parent=1 // pred_check
      _
    $region15: #{tpu_custom_call.1} parent=1 // pred_check_branch
      %26 = sbr.rel (0) target = $region17
    $region16: #{tpu_custom_call.1} parent=1 // pred_region
      _
    $region17: #{tpu_custom_call.1} parent=1 // pred_fallthru
      _
    // Predicated region
    $region18: #{tpu_custom_call.1} parent=1 // pred_check
      _
    $region19: #{tpu_custom_call.1} parent=1 // pred_check_branch
      %28 = sbr.rel (0) target = $region21
    $region20: #{tpu_custom_call.1} parent=1 // pred_region
      _
    $region21: #{tpu_custom_call.1} parent=1 // pred_fallthru
      _
    // Predicated region
    $region22: #{tpu_custom_call.1} parent=1 // pred_check
      _
    $region23: #{tpu_custom_call.1} parent=1 // pred_check_branch
      %30 = sbr.rel (0) target = $region25
    $region24: #{tpu_custom_call.1} parent=1 // pred_region
      _
    $region25: #{tpu_custom_call.1} parent=1 // pred_fallthru
      _
    // Predicated region
    $region26: #{tpu_custom_call.1} parent=1 // pred_check
      _
    $region27: #{tpu_custom_call.1} parent=1 // pred_check_branch
      %32 = sbr.rel (0) target = $region29
    $region28: #{tpu_custom_call.1} parent=1 // pred_region
      %s34 = ssub.s32 2048, 2048
      %35 = vsyncadd [#allocation4], %s34
      %s36 = sshll.u32 [#allocation3], 4
      %s37 = int_to_ptr.vmem [resolvable:$true] %s36
      %42 = dma.hbm_to_vmem [thread:$0]  %s6, 2048, %s37, [#allocation4], 64, 64, 4
    $region29: #{tpu_custom_call.1} parent=1 // pred_fallthru
      _
    // Predicated region
    $region30: #{tpu_custom_call.1} parent=1 // pred_check
      _
    $region31: #{tpu_custom_call.1} parent=1 // pred_check_branch
      %44 = sbr.rel (0) target = $region33
    $region32: #{tpu_custom_call.1} parent=1 // pred_region
      _
    $region33: #{tpu_custom_call.1} parent=1 // pred_fallthru
      _
    // Predicated region
    $region34: #{tpu_custom_call.1} parent=1 // pred_check
      _
    $region35: #{tpu_custom_call.1} parent=1 // pred_check_branch
      %46 = sbr.rel (0) target = $region37
    $region36: #{tpu_custom_call.1} parent=1 // pred_region
      _
    $region37: #{tpu_custom_call.1} parent=1 // pred_fallthru
      _
    // Predicated region
    $region38: #{tpu_custom_call.1} parent=1 // pred_check
      _
    $region39: #{tpu_custom_call.1} parent=1 // pred_check_branch
      %48 = sbr.rel (0) target = $region41
    $region40: #{tpu_custom_call.1} parent=1 // pred_region
      _
    $region41: #{tpu_custom_call.1} parent=1 // pred_fallthru
      _
    // Predicated region
    $region42: #{tpu_custom_call.1} parent=1 // pred_check
      _
    $region43: #{tpu_custom_call.1} parent=1 // pred_check_branch
      %50 = sbr.rel (0) target = $region45
    $region44: #{tpu_custom_call.1} parent=1 // pred_region
      _
    $region45: #{tpu_custom_call.1} parent=1 // pred_fallthru
      _
    // Predicated region
    $region46: #{tpu_custom_call.1} parent=1 // pred_check
      _
    $region47: #{tpu_custom_call.1} parent=1 // pred_check_branch
      %52 = sbr.rel (0) target = $region49
    $region48: #{tpu_custom_call.1} parent=1 // pred_region
      %53 = dma.done [#allocation4], 2048
    $region49: #{tpu_custom_call.1} parent=1 // pred_fallthru
      _
    %v55 = vld [vmem:[%s0] sm:$0xff]
    %v56 = vld [vmem:[%s1] sm:$0xff]
    %v57 = vpack.c.bf16 %v55, %v55
    %v58 = vld [vmem:[%s2] sm:$0xff]
    %v59 = vld [vmem:[%s2 + $0x8] sm:$0xff]
    %v60 = vld [vmem:[%s2 + $0x10] sm:$0x33]
    %v61 = vpack.c.bf16 %v56, %v56
    %v62 = vld [vmem:[%s3] sm:$0x77]
    %v64 = vunpack.c.l.b16 %v62
    %v65 = vunpack.c.h.b16 %v62
    %v66 = vpack.c.b16 %v64, %v64
    %v67 = vpack.c.b16 %v65, %v65
    %vm68 = vcmask 48128
    %v70 = vsel %vm68, %v61, 0
    %vm72 = vcmask 1042432
    %v74 = vsel %vm72, %v66, 0
    %v77 = vsel %vm72, %v67, 0
    %79 = vmatprep.subr.bf16.mxu0 0
    %80 = vmatpush1.bf16.msra.mxu0 0
    %81 = vmatprep.subr.bf16.mxu0 0
    %82 = vmatpush1.bf16.msra.mxu0 0
    %83 = vmatprep.subr.bf16.mxu0 0
    %84 = vmatpush1.bf16.msra.mxu0 0
    %85 = vmatprep.subr.bf16.mxu0 0
    %86 = vmatpush1.bf16.msra.mxu0 0
    %87 = vmatprep.subr.bf16.mxu0 0
    %88 = vmatpush1.bf16.msra.mxu0 0
    %89 = vmatprep.subr.bf16.mxu0 0
    %90 = vmatpush1.bf16.msra.mxu0 0
    %91 = vmatprep.subr.bf16.mxu0 0
    %92 = vmatpush1.bf16.msra.mxu0 0
    %93 = vmatprep.subr.bf16.mxu0 %v77
    %94 = vmatpush1.bf16.msra.mxu0 %v74
    %95 = vmatprep.subr.bf16.mxu0 0
    %96 = vmatpush2.bf16.msra.mxu0 0
    %97 = vmatprep.subr.bf16.mxu0 0
    %98 = vmatpush2.bf16.msra.mxu0 0
    %99 = vmatprep.subr.bf16.mxu0 0
    %100 = vmatpush2.bf16.msra.mxu0 0
    %101 = vmatprep.subr.bf16.mxu0 0
    %102 = vmatpush2.bf16.msra.mxu0 0
    %103 = vmatprep.subr.bf16.mxu0 0
    %104 = vmatpush2.bf16.msra.mxu0 0
    %105 = vmatprep.subr.bf16.mxu0 0
    %106 = vmatpush2.bf16.msra.mxu0 0
    %107 = vmatprep.subr.bf16.mxu0 0
    %108 = vmatpush2.bf16.msra.mxu0 0
    %109 = vmatprep.subr.bf16.mxu0 0
    %110 = vmatpush2.bf16.msra.mxu0 0
    %111 = vmatprep.mubr.bf16.mxu0 0
    %112 = vmatmul.mubr.bf16.gmra.mxu0 %v70
    %v113 = vpop.f32.mrf.mxu0
    %v114 = vadd.f32 0.0, %v113
    %v115 = vpop.f32.mrf.mxu0
    %v116 = vadd.f32 0.0, %v115
    %v117 = vpop.f32.mrf.mxu0
    %v118 = vpop.f32.mrf.mxu0
    %119 = vdwg.mxu0
    %v123 = vunpack.c.l.b16 %v58
    %v124 = vunpack.c.h.b16 %v58
    %v125 = vunpack.c.l.b16 %v59
    %v126 = vunpack.c.h.b16 %v59
    %v127 = vunpack.c.l.b16 %v60
    %v128 = vunpack.c.h.b16 %v60
    %v129 = vpack.c.b16 %v125, %v123
    %v130 = vpack.c.b16 %v126, %v124
    %v131 = vpack.c.b16 %v127, %v127
    %v132 = vpack.c.b16 %v128, %v128
    %vm135 = vcmask 162816
    %v137 = vsel %vm135, %v57, 0
    %vm139 = vcmask 1041408
    %v141 = vsel %vm139, %v131, 0
    %v144 = vsel %vm139, %v132, 0
    %146 = vmatprep.subr.bf16.mxu0 0
    %147 = vmatpush1.bf16.msra.mxu0 0
    %148 = vmatprep.subr.bf16.mxu0 0
    %149 = vmatpush1.bf16.msra.mxu0 0
    %150 = vmatprep.subr.bf16.mxu0 0
    %151 = vmatpush1.bf16.msra.mxu0 0
    %152 = vmatprep.subr.bf16.mxu0 0
    %153 = vmatpush1.bf16.msra.mxu0 0
    %154 = vmatprep.subr.bf16.mxu0 0
    %155 = vmatpush1.bf16.msra.mxu0 0
    %156 = vmatprep.subr.bf16.mxu0 0
    %157 = vmatpush1.bf16.msra.mxu0 0
    %158 = vmatprep.subr.bf16.mxu0 %v144
    %159 = vmatpush1.bf16.msra.mxu0 %v141
    %160 = vmatprep.subr.bf16.mxu0 %v130
    %161 = vmatpush1.bf16.msra.mxu0 %v129
    %162 = vmatprep.subr.bf16.mxu0 0
    %163 = vmatpush2.bf16.msra.mxu0 0
    %164 = vmatprep.subr.bf16.mxu0 0
    %165 = vmatpush2.bf16.msra.mxu0 0
    %166 = vmatprep.subr.bf16.mxu0 0
    %167 = vmatpush2.bf16.msra.mxu0 0
    %168 = vmatprep.subr.bf16.mxu0 0
    %169 = vmatpush2.bf16.msra.mxu0 0
    %170 = vmatprep.subr.bf16.mxu0 0
    %171 = vmatpush2.bf16.msra.mxu0 0
    %172 = vmatprep.subr.bf16.mxu0 0
    %173 = vmatpush2.bf16.msra.mxu0 0
    %174 = vmatprep.subr.bf16.mxu0 0
    %175 = vmatpush2.bf16.msra.mxu0 0
    %176 = vmatprep.subr.bf16.mxu0 0
    %177 = vmatpush2.bf16.msra.mxu0 0
    %178 = vmatprep.mubr.bf16.mxu0 0
    %179 = vmatmul.mubr.bf16.gmra.mxu0 %v137
    %v180 = vpop.f32.mrf.mxu0
    %v181 = vadd.f32 %v114, %v180
    %v182 = vpop.f32.mrf.mxu0
    %v183 = vadd.f32 %v116, %v182
    %v184 = vpop.f32.mrf.mxu0
    %v185 = vpop.f32.mrf.mxu0
    %186 = vdwg.mxu0
    %v187 = vld [vmem:[%s4] sm:$0x3]
    %v189 = vlaneseq
    %v190 = vshrl.u32 %v189, 7
    %v191 = vsub.s32 0, %v190
    %v192 = vrot.slane %v187, %v191
    %v193 = vlaneseq
    %v194 = vshrl.u32 %v193, 7
    %v195 = vsub.s32 1, %v194
    %v196 = vrot.slane %v187, %v195
    %v199 = vadd.f32 %v181, %v192
    %v200 = vadd.f32 %v183, %v196
    %vm201 = vcmp.gt.f32.partialorder %v199, 0.0
    %vm202 = vcmp.gt.f32.partialorder %v200, 0.0
    %v203 = vld [vmem:[%s5] sm:$0x3]
    %v205 = vlaneseq
    %v206 = vshrl.u32 %v205, 7
    %v207 = vsub.s32 0, %v206
    %v208 = vrot.slane %v203, %v207
    %v209 = vlaneseq
    %v210 = vshrl.u32 %v209, 7
    %v211 = vsub.s32 1, %v210
    %v212 = vrot.slane %v203, %v211
    %v215 = vmul.f32 %v208, %v199
    %v216 = vmul.f32 %v212, %v200
    %v217 = vsel %vm201, %v199, %v215
    %v218 = vsel %vm202, %v200, %v216
    %v219 = vpack.c.bf16 %v217, %v217
    %v220 = vpack.c.bf16 %v218, %v218
    %v221 = vld [vmem:[#allocation3] sm:$0xf]
    %v222 = vld [vmem:[#allocation3 + $0x4] sm:$0xf]
    %v223 = vld [vmem:[#allocation3 + $0x8] sm:$0xf]
    %v224 = vld [vmem:[#allocation3 + $0xc] sm:$0xf]
    %v225 = vld [vmem:[#allocation3 + $0x10] sm:$0xf]
    %v226 = vld [vmem:[#allocation3 + $0x14] sm:$0xf]
    %v227 = vld [vmem:[#allocation3 + $0x18] sm:$0xf]
    %v228 = vld [vmem:[#allocation3 + $0x1c] sm:$0xf]
    %v229 = vld [vmem:[#allocation3 + $0x20] sm:$0xf]
    %v230 = vld [vmem:[#allocation3 + $0x24] sm:$0xf]
    %v231 = vld [vmem:[#allocation3 + $0x28] sm:$0xf]
    %v232 = vld [vmem:[#allocation3 + $0x2c] sm:$0xf]
    %v233 = vld [vmem:[#allocation3 + $0x30] sm:$0xf]
    %v234 = vld [vmem:[#allocation3 + $0x34] sm:$0xf]
    %v235 = vld [vmem:[#allocation3 + $0x38] sm:$0xf]
    %v236 = vld [vmem:[#allocation3 + $0x3c] sm:$0xf]
    %v237 = vld [vmem:[#allocation3 + $0x40] sm:$0xf]
    %v238 = vld [vmem:[#allocation3 + $0x44] sm:$0xf]
    %v239 = vld [vmem:[#allocation3 + $0x48] sm:$0xf]
    %v240 = vld [vmem:[#allocation3 + $0x4c] sm:$0xf]
    %v241 = vld [vmem:[#allocation3 + $0x50] sm:$0xf]
    %v242 = vld [vmem:[#allocation3 + $0x54] sm:$0xf]
    %v243 = vld [vmem:[#allocation3 + $0x58] sm:$0xf]
    %v244 = vld [vmem:[#allocation3 + $0x5c] sm:$0xf]
    %v245 = vld [vmem:[#allocation3 + $0x60] sm:$0xf]
    %v246 = vld [vmem:[#allocation3 + $0x64] sm:$0xf]
    %v247 = vld [vmem:[#allocation3 + $0x68] sm:$0xf]
    %v248 = vld [vmem:[#allocation3 + $0x6c] sm:$0xf]
    %v249 = vld [vmem:[#allocation3 + $0x70] sm:$0xf]
    %v250 = vld [vmem:[#allocation3 + $0x74] sm:$0xf]
    %v251 = vld [vmem:[#allocation3 + $0x78] sm:$0xf]
    %v252 = vld [vmem:[#allocation3 + $0x7c] sm:$0xf]
    %v253 = vld [vmem:[%s7] sm:$0x1]
    %v255 = vlaneseq
    %v256 = vshrl.u32 %v255, 7
    %v257 = vsub.s32 0, %v256
    %v258 = vrot.slane %v253, %v257
    %v292 = vunpack.c.l.b16 %v221
    %v293 = vunpack.c.l.b16 %v222
    %v294 = vunpack.c.l.b16 %v223
    %v295 = vunpack.c.l.b16 %v224
    %v296 = vunpack.c.l.b16 %v225
    %v297 = vunpack.c.l.b16 %v226
    %v298 = vunpack.c.l.b16 %v227
    %v299 = vunpack.c.l.b16 %v228
    %v300 = vunpack.c.l.b16 %v229
    %v301 = vunpack.c.l.b16 %v230
    %v302 = vunpack.c.l.b16 %v231
    %v303 = vunpack.c.l.b16 %v232
    %v304 = vunpack.c.l.b16 %v233
    %v305 = vunpack.c.l.b16 %v234
    %v306 = vunpack.c.l.b16 %v235
    %v307 = vunpack.c.l.b16 %v236
    %v308 = vunpack.c.l.b16 %v237
    %v309 = vunpack.c.l.b16 %v238
    %v310 = vunpack.c.l.b16 %v239
    %v311 = vunpack.c.l.b16 %v240
    %v312 = vunpack.c.l.b16 %v241
    %v313 = vunpack.c.l.b16 %v242
    %v314 = vunpack.c.l.b16 %v243
    %v315 = vunpack.c.l.b16 %v244
    %v316 = vunpack.c.l.b16 %v245
    %v317 = vunpack.c.l.b16 %v246
    %v318 = vunpack.c.l.b16 %v247
    %v319 = vunpack.c.l.b16 %v248
    %v320 = vunpack.c.l.b16 %v249
    %v321 = vunpack.c.l.b16 %v250
    %v322 = vunpack.c.l.b16 %v251
    %v323 = vunpack.c.l.b16 %v252
    %v324 = vpack.c.b16 %v293, %v292
    %v325 = vpack.c.b16 %v295, %v294
    %v326 = vpack.c.b16 %v297, %v296
    %v327 = vpack.c.b16 %v299, %v298
    %v328 = vpack.c.b16 %v301, %v300
    %v329 = vpack.c.b16 %v303, %v302
    %v330 = vpack.c.b16 %v305, %v304
    %v331 = vpack.c.b16 %v307, %v306
    %v332 = vpack.c.b16 %v309, %v308
    %v333 = vpack.c.b16 %v311, %v310
    %v334 = vpack.c.b16 %v313, %v312
    %v335 = vpack.c.b16 %v315, %v314
    %v336 = vpack.c.b16 %v317, %v316
    %v337 = vpack.c.b16 %v319, %v318
    %v338 = vpack.c.b16 %v321, %v320
    %v339 = vpack.c.b16 %v323, %v322
    %356 = vmatprep.subr.bf16.mxu0 0
    %357 = vmatpush1.bf16.msra.mxu0 %v331
    %358 = vmatprep.subr.bf16.mxu0 0
    %359 = vmatpush1.bf16.msra.mxu0 %v330
    %360 = vmatprep.subr.bf16.mxu0 0
    %361 = vmatpush1.bf16.msra.mxu0 %v329
    %362 = vmatprep.subr.bf16.mxu0 0
    %363 = vmatpush1.bf16.msra.mxu0 %v328
    %364 = vmatprep.subr.bf16.mxu0 0
    %365 = vmatpush1.bf16.msra.mxu0 %v327
    %366 = vmatprep.subr.bf16.mxu0 0
    %367 = vmatpush1.bf16.msra.mxu0 %v326
    %368 = vmatprep.subr.bf16.mxu0 0
    %369 = vmatpush1.bf16.msra.mxu0 %v325
    %370 = vmatprep.subr.bf16.mxu0 0
    %371 = vmatpush1.bf16.msra.mxu0 %v324
    %372 = vmatprep.subr.bf16.mxu0 0
    %373 = vmatpush2.bf16.msra.mxu0 %v339
    %374 = vmatprep.subr.bf16.mxu0 0
    %375 = vmatpush2.bf16.msra.mxu0 %v338
    %376 = vmatprep.subr.bf16.mxu0 0
    %377 = vmatpush2.bf16.msra.mxu0 %v337
    %378 = vmatprep.subr.bf16.mxu0 0
    %379 = vmatpush2.bf16.msra.mxu0 %v336
    %380 = vmatprep.subr.bf16.mxu0 0
    %381 = vmatpush2.bf16.msra.mxu0 %v335
    %382 = vmatprep.subr.bf16.mxu0 0
    %383 = vmatpush2.bf16.msra.mxu0 %v334
    %384 = vmatprep.subr.bf16.mxu0 0
    %385 = vmatpush2.bf16.msra.mxu0 %v333
    %386 = vmatprep.subr.bf16.mxu0 0
    %387 = vmatpush2.bf16.msra.mxu0 %v332
    %388 = vmatprep.mubr.bf16.mxu0 %v220
    %389 = vmatmul.mubr.bf16.gmra.mxu0 %v219
    %v390 = vpop.f32.mrf.mxu0
    %v391 = vadd.f32 %v258, %v390
    %v392 = vpop.f32.mrf.mxu0
    %v393 = vpop.f32.mrf.mxu0
    %v394 = vpop.f32.mrf.mxu0
    %395 = vdwg.mxu0
    %vm396 = vcmp.gt.f32.partialorder %v391, 0.0
    %v397 = vld [vmem:[%s8] sm:$0x1]
    %v399 = vlaneseq
    %v400 = vshrl.u32 %v399, 7
    %v401 = vsub.s32 0, %v400
    %v402 = vrot.slane %v397, %v401
    %v404 = vmul.f32 %v402, %v391
    %v405 = vsel %vm396, %v391, %v404
    %v406 = vpack.c.bf16 %v405, %v405
    %v407 = vld [vmem:[%s9] sm:$0xf]
    %v408 = vld [vmem:[%s9 + $0x4] sm:$0xf]
    %v409 = vld [vmem:[%s9 + $0x8] sm:$0xf]
    %v410 = vld [vmem:[%s9 + $0xc] sm:$0xf]
    %v411 = vld [vmem:[%s9 + $0x10] sm:$0xf]
    %v412 = vld [vmem:[%s9 + $0x14] sm:$0xf]
    %v413 = vld [vmem:[%s9 + $0x18] sm:$0xf]
    %v414 = vld [vmem:[%s9 + $0x1c] sm:$0xf]
    %v415 = vld [vmem:[%s9 + $0x20] sm:$0xf]
    %v416 = vld [vmem:[%s9 + $0x24] sm:$0xf]
    %v417 = vld [vmem:[%s9 + $0x28] sm:$0xf]
    %v418 = vld [vmem:[%s9 + $0x2c] sm:$0xf]
    %v419 = vld [vmem:[%s9 + $0x30] sm:$0xf]
    %v420 = vld [vmem:[%s9 + $0x34] sm:$0xf]
    %v421 = vld [vmem:[%s9 + $0x38] sm:$0xf]
    %v422 = vld [vmem:[%s9 + $0x3c] sm:$0xf]
    %v423 = vld [vmem:[#allocation2] sm:$0x1]
    %v425 = vlaneseq
    %v426 = vshrl.u32 %v425, 7
    %v427 = vsub.s32 0, %v426
    %v428 = vrot.slane %v423, %v427
    %v446 = vunpack.c.l.b16 %v407
    %v447 = vunpack.c.l.b16 %v408
    %v448 = vunpack.c.l.b16 %v409
    %v449 = vunpack.c.l.b16 %v410
    %v450 = vunpack.c.l.b16 %v411
    %v451 = vunpack.c.l.b16 %v412
    %v452 = vunpack.c.l.b16 %v413
    %v453 = vunpack.c.l.b16 %v414
    %v454 = vunpack.c.l.b16 %v415
    %v455 = vunpack.c.l.b16 %v416
    %v456 = vunpack.c.l.b16 %v417
    %v457 = vunpack.c.l.b16 %v418
    %v458 = vunpack.c.l.b16 %v419
    %v459 = vunpack.c.l.b16 %v420
    %v460 = vunpack.c.l.b16 %v421
    %v461 = vunpack.c.l.b16 %v422
    %v462 = vpack.c.b16 %v447, %v446
    %v463 = vpack.c.b16 %v449, %v448
    %v464 = vpack.c.b16 %v451, %v450
    %v465 = vpack.c.b16 %v453, %v452
    %v466 = vpack.c.b16 %v455, %v454
    %v467 = vpack.c.b16 %v457, %v456
    %v468 = vpack.c.b16 %v459, %v458
    %v469 = vpack.c.b16 %v461, %v460
    %478 = vmatprep.subr.bf16.mxu0 0
    %479 = vmatpush1.bf16.msra.mxu0 %v469
    %480 = vmatprep.subr.bf16.mxu0 0
    %481 = vmatpush1.bf16.msra.mxu0 %v468
    %482 = vmatprep.subr.bf16.mxu0 0
    %483 = vmatpush1.bf16.msra.mxu0 %v467
    %484 = vmatprep.subr.bf16.mxu0 0
    %485 = vmatpush1.bf16.msra.mxu0 %v466
    %486 = vmatprep.subr.bf16.mxu0 0
    %487 = vmatpush1.bf16.msra.mxu0 %v465
    %488 = vmatprep.subr.bf16.mxu0 0
    %489 = vmatpush1.bf16.msra.mxu0 %v464
    %490 = vmatprep.subr.bf16.mxu0 0
    %491 = vmatpush1.bf16.msra.mxu0 %v463
    %492 = vmatprep.subr.bf16.mxu0 0
    %493 = vmatpush1.bf16.msra.mxu0 %v462
    %494 = vmatprep.subr.bf16.mxu0 0
    %495 = vmatpush2.bf16.msra.mxu0 0
    %496 = vmatprep.subr.bf16.mxu0 0
    %497 = vmatpush2.bf16.msra.mxu0 0
    %498 = vmatprep.subr.bf16.mxu0 0
    %499 = vmatpush2.bf16.msra.mxu0 0
    %500 = vmatprep.subr.bf16.mxu0 0
    %501 = vmatpush2.bf16.msra.mxu0 0
    %502 = vmatprep.subr.bf16.mxu0 0
    %503 = vmatpush2.bf16.msra.mxu0 0
    %504 = vmatprep.subr.bf16.mxu0 0
    %505 = vmatpush2.bf16.msra.mxu0 0
    %506 = vmatprep.subr.bf16.mxu0 0
    %507 = vmatpush2.bf16.msra.mxu0 0
    %508 = vmatprep.subr.bf16.mxu0 0
    %509 = vmatpush2.bf16.msra.mxu0 0
    %510 = vmatprep.mubr.bf16.mxu0 0
    %511 = vmatmul.mubr.bf16.gmra.mxu0 %v406
    %v512 = vpop.f32.mrf.mxu0
    %v513 = vadd.f32 %v428, %v512
    %v514 = vpop.f32.mrf.mxu0
    %v515 = vpop.f32.mrf.mxu0
    %v516 = vpop.f32.mrf.mxu0
    %517 = vdwg.mxu0
    %vm518 = vcmask 7168
    %519 = vst.msk [vmem:[#allocation5] sm:$0xff] %vm518, %v513
    // Predicated region
    $region50: #{tpu_custom_call.1} parent=1 // pred_check
      _
    $region51: #{tpu_custom_call.1} parent=1 // pred_check_branch
      %521 = sbr.rel (0) target = $region53
    $region52: #{tpu_custom_call.1} parent=1 // pred_region
      // Predicated region
      $region54: #{tpu_custom_call.1} parent=52 // pred_check
        _
      $region55: #{tpu_custom_call.1} parent=52 // pred_check_branch
        %523 = sbr.rel (0) target = $region57
      $region56: #{tpu_custom_call.1} parent=52 // pred_region
        // Predicated region
        $region58: #{tpu_custom_call.1} parent=56 // pred_check
          _
        $region59: #{tpu_custom_call.1} parent=56 // pred_check_branch
          %525 = sbr.rel target = $region61
        $region60: #{tpu_custom_call.1} parent=56 // pred_region
          // Predicated region
          $region73: #{tpu_custom_call.1} parent=60 // pred_check
            _
          $region74: #{tpu_custom_call.1} parent=60 // pred_check_branch
            %541 = sbr.rel (0) target = $region76
          $region75: #{tpu_custom_call.1} parent=60 // pred_region
            %s543 = ssub.s32 4, 1
            loop: start=0, step=1, limit=1
            $region77: #{tpu_custom_call.1} parent=75 // loop_pre_header
              _
            $region78: #{tpu_custom_call.1} parent=75 // loop_header
              %s545 = sphi 0, %s549
              %p546 = scmp.ge.s32.totalorder %s545, 1
              %s550 = sphi [#allocation5], [#allocation5]
              %s551 = sphi %s11, %s11
            $region79: #{tpu_custom_call.1} parent=75 // loop_header_branch
              %548 = sbr.rel (%p546) target = $region83
            $region80: #{tpu_custom_call.1} parent=75 // loop_body
              %v552 = vld [vmem:[%s550] sm:%s543]
              %553 = vst [vmem:[%s551] sm:%s543] %v552
            $region81: #{tpu_custom_call.1} parent=75 // loop_footer
              %s549 = sadd.s32 1, %s545
            $region82: #{tpu_custom_call.1} parent=75 // loop_footer_branch
              %544 = sbr.rel target = $region78
            $region83: #{tpu_custom_call.1} parent=75 // loop_exit
              _
          $region76: #{tpu_custom_call.1} parent=60 // pred_fallthru
            _
        $region61: #{tpu_custom_call.1} parent=56 // pred_fallthru
          _
        // Predicated region
        $region62: #{tpu_custom_call.1} parent=56 // pred_check
          _
        $region63: #{tpu_custom_call.1} parent=56 // pred_check_branch
          %527 = sbr.rel (0) target = $region65
        $region64: #{tpu_custom_call.1} parent=56 // pred_region
          %s529 = ssub.s32 4, 1
          loop: start=0, step=1, limit=1
          $region66: #{tpu_custom_call.1} parent=64 // loop_pre_header
            _
          $region67: #{tpu_custom_call.1} parent=64 // loop_header
            %s531 = sphi 0, %s535
            %p532 = scmp.ge.s32.totalorder %s531, 1
            %s536 = sphi [#allocation5], [#allocation5]
            %s537 = sphi %s11, %s11
          $region68: #{tpu_custom_call.1} parent=64 // loop_header_branch
            %534 = sbr.rel (%p532) target = $region72
          $region69: #{tpu_custom_call.1} parent=64 // loop_body
            %v538 = vld [vmem:[%s536] sm:%s529]
            %539 = vst [vmem:[%s537] sm:%s529] %v538
          $region70: #{tpu_custom_call.1} parent=64 // loop_footer
            %s535 = sadd.s32 1, %s531
          $region71: #{tpu_custom_call.1} parent=64 // loop_footer_branch
            %530 = sbr.rel target = $region67
          $region72: #{tpu_custom_call.1} parent=64 // loop_exit
            _
        $region65: #{tpu_custom_call.1} parent=56 // pred_fallthru
          _
      $region57: #{tpu_custom_call.1} parent=52 // pred_fallthru
        _
      %554 = vnop
    $region53: #{tpu_custom_call.1} parent=1 // pred_fallthru
      _
    // Predicated region
    $region84: #{tpu_custom_call.1} parent=1 // pred_check
      _
    $region85: #{tpu_custom_call.1} parent=1 // pred_check_branch
      %556 = sbr.rel (0) target = $region87
    $region86: #{tpu_custom_call.1} parent=1 // pred_region
      _
    $region87: #{tpu_custom_call.1} parent=1 // pred_fallthru
      _
    %557 = vsyncpa [#allocation4], 1

</llo_original>
